<compile_context>
chip_gen: v5e
topology: v5e:2x2
jax: 0.10.0
libtpu: 0.0.40
codegen_flags: <defaults>
</compile_context>

<pallas_src>
import jax
import jax.numpy as jnp
from jax.experimental import pallas as pl
from jax.experimental.pallas import tpu as pltpu

LANE = 128     # lane width of a vreg (last dim)
SUBLANE = 8    # sublane count of a vreg (second-to-last dim)


def _round_up(n, m):
    return ((n + m - 1) // m) * m


def _device_kind():
    try:
        return jax.devices()[0].device_kind.lower()
    except Exception:
        return ""


def _is_v7x():
    kind = _device_kind()
    return ("v7" in kind) or ("tpu7" in kind) or ("7x" in kind)


def _vmem_physical_bytes():
    # v7x has 64 MiB VMEM per TensorCore; v5e/v6e have 128 MiB.
    return (64 if _is_v7x() else 128) * 1024 * 1024


def _default_use_bf16():
    # bf16 MXU operands are the fast path on every TPU generation (f32 matmul is
    # multi-pass on the bf16-native MXU) and halve weight HBM/VMEM traffic.
    return "tpu" in _device_kind()


# --------------------------------------------------------------------------------------
# Kernel
# --------------------------------------------------------------------------------------
def qvalue_kernel(x_ref, w1_ref, b1_ref, w2_ref, b2_ref, w3_ref, b3_ref, out_ref):
    # x stays f32 in HBM; cast to the MXU operand dtype (bf16 or f32) in VMEM.
    x = x_ref[...].astype(w1_ref.dtype)                      # (TB, S)

    # fc1 + ReLU (MXU matmul, f32 accumulation; bias add + ReLU in f32)
    h1 = jnp.dot(x, w1_ref[...], preferred_element_type=jnp.float32) + b1_ref[...]
    h1 = jnp.maximum(h1, 0.0)

    # fc2 + ReLU
    h2 = jnp.dot(h1.astype(w2_ref.dtype), w2_ref[...],
                 preferred_element_type=jnp.float32) + b2_ref[...]
    h2 = jnp.maximum(h2, 0.0)

    # fc3 (no activation) -> narrow (TB, A) store
    out = jnp.dot(h2.astype(w3_ref.dtype), w3_ref[...],
                  preferred_element_type=jnp.float32) + b3_ref[...]
    out_ref[...] = out.astype(out_ref.dtype)


# --------------------------------------------------------------------------------------
# One-time parameter preparation (pad + cast once, not per call)
# --------------------------------------------------------------------------------------
def prepare_params(params, *, use_bf16=None):
    """Pad the hidden (lane) dims to a multiple of 128 and cast weights to the MXU
    operand dtype ONCE. state_dim (K of fc1) and action_dim (N of fc3) keep their true
    sizes so x needs no per-call padding and the output store is only B*A*4 bytes.
    Zero padding is semantics-preserving: padded weight/bias entries are 0 and
    ReLU(0)=0 propagates, so padded hidden columns contribute nothing."""
    if use_bf16 is None:
        use_bf16 = _default_use_bf16()
    mm_dtype = jnp.bfloat16 if use_bf16 else jnp.float32

    w1 = jnp.asarray(params["w1"]); b1 = jnp.asarray(params["b1"]).reshape(1, -1)
    w2 = jnp.asarray(params["w2"]); b2 = jnp.asarray(params["b2"]).reshape(1, -1)
    w3 = jnp.asarray(params["w3"]); b3 = jnp.asarray(params["b3"]).reshape(1, -1)

    S, H = w1.shape
    A = w3.shape[1]
    H_pad = _round_up(H, LANE)

    def pad2(a, rows, cols, dtype):
        a = a.astype(dtype)
        return jnp.pad(a, ((0, rows - a.shape[0]), (0, cols - a.shape[1])))

    return {
        "_prepared": True,
        "mm_dtype": mm_dtype,
        "w1": pad2(w1, S, H_pad, mm_dtype),        # (S, H_pad)
        "b1": pad2(b1, 1, H_pad, jnp.float32),     # (1, H_pad)
        "w2": pad2(w2, H_pad, H_pad, mm_dtype),    # (H_pad, H_pad)
        "b2": pad2(b2, 1, H_pad, jnp.float32),     # (1, H_pad)
        "w3": pad2(w3, H_pad, A, mm_dtype),        # (H_pad, A)  -- true A, narrow store
        "b3": b3.astype(jnp.float32),              # (1, A)
    }


# --------------------------------------------------------------------------------------
# VMEM-budget-derived batch tile
# --------------------------------------------------------------------------------------
def _auto_block_b(B, S, H_pad, A, mm_bytes, phys_vmem):
    # VMEM layout pads the last dim to 128 lanes, so size x/out tiles accordingly.
    S_lay = _round_up(S, LANE)
    A_lay = _round_up(A, LANE)
    budget = phys_vmem // 2                                   # leave generous headroom

    resident = ((_round_up(S, 16) * H_pad + H_pad * H_pad + H_pad * A_lay) * mm_bytes
                + (2 * H_pad + A_lay) * SUBLANE * 4)          # single-buffered weights + biases

    per_row = (2 * S_lay * 4          # double-buffered x tile (f32 in HBM/VMEM)
               + 2 * A_lay * 4        # double-buffered out tile (f32)
               + 2 * H_pad * 4        # h1, h2 accumulators (f32)
               + 2 * H_pad * mm_bytes # bf16/f32 operand copies feeding the next matmul
               + S_lay * mm_bytes)    # cast of x

    avail = max(budget - resident, SUBLANE * per_row)
    block_b = (avail // per_row) // SUBLANE * SUBLANE
    return int(max(SUBLANE, min(block_b, 4096)))


# --------------------------------------------------------------------------------------
# Wrapper
# --------------------------------------------------------------------------------------
def qvalue_net(x, params, *, block_b=None, use_bf16=None, vmem_limit_bytes=None):
    """x: (B, state_dim) float32. params: output of prepare_params() (or raw
    {'w1','b1',...} with weights stored (in, out), padded here as a convenience).
    Returns (B, action_dim) float32 = fc3(relu(fc2(relu(fc1(x)))))."""
    if not (isinstance(params, dict) and params.get("_prepared", False)):
        params = prepare_params(params, use_bf16=use_bf16)

    w1, b1 = params["w1"], params["b1"]
    w2, b2 = params["w2"], params["b2"]
    w3, b3 = params["w3"], params["b3"]
    mm_bytes = jnp.dtype(params["mm_dtype"]).itemsize

    B, S = x.shape
    assert w1.shape[0] == S, f"x feature dim {S} != w1 rows {w1.shape[0]}"
    H_pad = w1.shape[1]
    A = w3.shape[1]

    phys_vmem = _vmem_physical_bytes()
    if block_b is None:
        block_b = _auto_block_b(B, S, H_pad, A, mm_bytes, phys_vmem)
    block_b = max(SUBLANE, _round_up(block_b, SUBLANE))
    block_b = min(block_b, _round_up(B, SUBLANE))

    # v7x megacore: give the "parallel" batch axis at least 2 grid steps (when the
    # batch is big enough to split) so both TensorCores get work.
    if _is_v7x() and B > SUBLANE and -(-B // block_b) < 2:
        block_b = max(SUBLANE, _round_up(-(-B // 2), SUBLANE))

    if vmem_limit_bytes is None:
        vmem_limit_bytes = int(phys_vmem * 0.75)

    grid = (pl.cdiv(B, block_b),)

    def resident(shape):
        # Constant index_map => DMA'd once across all grid steps; Buffered(1) => a single
        # VMEM copy instead of the default double buffer (frees VMEM for bigger block_b).
        return pl.BlockSpec(shape, lambda i: (0, 0), pipeline_mode=pl.Buffered(1))

    flops = 2 * B * (S * H_pad + H_pad * H_pad + H_pad * A)
    bytes_accessed = int(
        x.size * x.dtype.itemsize + B * A * 4
        + sum(int(a.size) * a.dtype.itemsize for a in (w1, b1, w2, b2, w3, b3)))

    return pl.pallas_call(
        qvalue_kernel,
        out_shape=jax.ShapeDtypeStruct((B, A), jnp.float32),
        grid=grid,
        in_specs=[
            pl.BlockSpec((block_b, S), lambda i: (i, 0)),   # streamed x tiles (f32 in HBM)
            resident(w1.shape), resident(b1.shape),
            resident(w2.shape), resident(b2.shape),
            resident(w3.shape), resident(b3.shape),
        ],
        out_specs=pl.BlockSpec((block_b, A), lambda i: (i, 0)),  # narrow (B, A) output
        compiler_params=pltpu.CompilerParams(
            dimension_semantics=("parallel",),        # batch axis shards across v7x's 2 TCs
            vmem_limit_bytes=vmem_limit_bytes,
        ),
        cost_estimate=pl.CostEstimate(
            flops=flops, transcendentals=0, bytes_accessed=bytes_accessed),
    )(x, w1, b1, w2, b2, w3, b3)


# --------------------------------------------------------------------------------------
# Init (mimics torch.nn.Linear default: uniform +/- 1/sqrt(fan_in); stored (in, out))
# --------------------------------------------------------------------------------------
def init_params(key, state_dim, hidden_dim, action_dim):
    ks = jax.random.split(key, 6)

    def linear(kw, kb, fan_in, fan_out):
        bound = 1.0 / jnp.sqrt(fan_in)
        w = jax.random.uniform(kw, (fan_in, fan_out), jnp.float32, -bound, bound)
        b = jax.random.uniform(kb, (1, fan_out), jnp.float32, -bound, bound)
        return w, b

    w1, b1 = linear(ks[0], ks[1], state_dim, hidden_dim)
    w2, b2 = linear(ks[2], ks[3], hidden_dim, hidden_dim)
    w3, b3 = linear(ks[4], ks[5], hidden_dim, action_dim)
    return {"w1": w1, "b1": b1, "w2": w2, "b2": b2, "w3": w3, "b3": b3}


if __name__ == "__main__":
    key = jax.random.PRNGKey(0)
    k_params, k_x = jax.random.split(key)

    batch, state_dim, hidden_dim, action_dim = 2, 16, 32, 4

    raw = init_params(k_params, state_dim, hidden_dim, action_dim)
    x = jax.random.normal(k_x, (batch, state_dim), dtype=jnp.float32)

    # Reference in plain JAX (same math as the PyTorch module).
    def ref(x, p):
        h1 = jnp.maximum(x @ p["w1"] + p["b1"], 0.0)
        h2 = jnp.maximum(h1 @ p["w2"] + p["b2"], 0.0)
        return h2 @ p["w3"] + p["b3"]

    expected = ref(x, raw)

    # Exact f32 MXU path: bit-for-bit the original module semantics.
    prep_f32 = prepare_params(raw, use_bf16=False)
    out = qvalue_net(x, prep_f32)
    jax.block_until_ready(out)
    assert out.shape == (batch, action_dim)
    assert jnp.allclose(out, expected, atol=1e-5, rtol=1e-5)

    # Fast path: bf16 MXU operands (default on TPU), f32 accumulate/bias/ReLU.
    prep_fast = prepare_params(raw, use_bf16=True)
    out_fast = qvalue_net(x, prep_fast)
    jax.block_until_ready(out_fast)
    assert out_fast.shape == (batch, action_dim)
    assert jnp.allclose(out_fast, expected, atol=5e-2, rtol=5e-2)

    # Non-multiple-of-8 batch with a multi-step grid: exercises the partial-last-block
    # boundary masking that replaced the wrapper-side padding.
    x_odd = jax.random.normal(k_x, (13, state_dim), dtype=jnp.float32)
    out_odd = qvalue_net(x_odd, prep_f32, block_b=8)
    jax.block_until_ready(out_odd)
    assert out_odd.shape == (13, action_dim)
    assert jnp.allclose(out_odd, ref(x_odd, raw), atol=1e-5, rtol=1e-5)

    print("KERNEL_OK")
</pallas_src>

<mosaic_0001>
module attributes {stable_mosaic.version = 11 : i64} {
  func.func @qvalue_kernel(%arg0: i32, %arg1: memref<8x16xf32, #tpu.memory_space<vmem>>, %arg2: memref<16x128xf32, #tpu.memory_space<vmem>>, %arg3: memref<1x128xf32, #tpu.memory_space<vmem>>, %arg4: memref<128x128xf32, #tpu.memory_space<vmem>>, %arg5: memref<1x128xf32, #tpu.memory_space<vmem>>, %arg6: memref<128x4xf32, #tpu.memory_space<vmem>>, %arg7: memref<1x4xf32, #tpu.memory_space<vmem>>, %arg8: memref<8x4xf32, #tpu.memory_space<vmem>>) attributes {dimension_semantics = [#tpu.dimension_semantics<parallel>], iteration_bounds = array<i64: 1>, scalar_prefetch = 0 : i64, scratch_operands = 0 : i64, tpu.core_type = #tpu.core_type<tc>, window_params = [{transform_indices = @transform_0, window_bounds = array<i64: 8, 16>}, {pipeline_mode = #tpu.pipeline_mode<synchronous>, transform_indices = @transform_1, window_bounds = array<i64: 16, 128>}, {pipeline_mode = #tpu.pipeline_mode<synchronous>, transform_indices = @transform_2, window_bounds = array<i64: 1, 128>}, {pipeline_mode = #tpu.pipeline_mode<synchronous>, transform_indices = @transform_3, window_bounds = array<i64: 128, 128>}, {pipeline_mode = #tpu.pipeline_mode<synchronous>, transform_indices = @transform_4, window_bounds = array<i64: 1, 128>}, {pipeline_mode = #tpu.pipeline_mode<synchronous>, transform_indices = @transform_5, window_bounds = array<i64: 128, 4>}, {pipeline_mode = #tpu.pipeline_mode<synchronous>, transform_indices = @transform_6, window_bounds = array<i64: 1, 4>}, {transform_indices = @transform_7, window_bounds = array<i64: 8, 4>}]} {
    %c0 = arith.constant 0 : index
    %c0_0 = arith.constant 0 : index
    %0 = vector.load %arg1[%c0, %c0_0] : memref<8x16xf32, #tpu.memory_space<vmem>>, vector<8x16xf32>
    %c0_1 = arith.constant 0 : index
    %c0_2 = arith.constant 0 : index
    %1 = vector.load %arg2[%c0_1, %c0_2] : memref<16x128xf32, #tpu.memory_space<vmem>>, vector<16x128xf32>
    %cst = arith.constant dense<0.000000e+00> : vector<8x128xf32>
    %2 = tpu.matmul %0, %1, %cst {dimension_numbers = #tpu.dot_dimension_numbers<[1], [0], [0], [1], [0, 0, 1, 1], [], []>} : vector<8x16xf32>, vector<16x128xf32>, vector<8x128xf32> -> vector<8x128xf32>
    %c0_3 = arith.constant 0 : index
    %c0_4 = arith.constant 0 : index
    %3 = vector.load %arg3[%c0_3, %c0_4] : memref<1x128xf32, #tpu.memory_space<vmem>>, vector<1x128xf32>
    %4 = vector.broadcast %3 : vector<1x128xf32> to vector<8x128xf32>
    %5 = arith.addf %2, %4 : vector<8x128xf32>
    %cst_5 = arith.constant 0.000000e+00 : f32
    %6 = vector.broadcast %cst_5 : f32 to vector<8x128xf32>
    %7 = arith.maximumf %5, %6 : vector<8x128xf32>
    %c0_6 = arith.constant 0 : index
    %c0_7 = arith.constant 0 : index
    %8 = vector.load %arg4[%c0_6, %c0_7] : memref<128x128xf32, #tpu.memory_space<vmem>>, vector<128x128xf32>
    %cst_8 = arith.constant dense<0.000000e+00> : vector<8x128xf32>
    %9 = tpu.matmul %7, %8, %cst_8 {dimension_numbers = #tpu.dot_dimension_numbers<[1], [0], [0], [1], [0, 0, 1, 1], [], []>} : vector<8x128xf32>, vector<128x128xf32>, vector<8x128xf32> -> vector<8x128xf32>
    %c0_9 = arith.constant 0 : index
    %c0_10 = arith.constant 0 : index
    %10 = vector.load %arg5[%c0_9, %c0_10] : memref<1x128xf32, #tpu.memory_space<vmem>>, vector<1x128xf32>
    %11 = vector.broadcast %10 : vector<1x128xf32> to vector<8x128xf32>
    %12 = arith.addf %9, %11 : vector<8x128xf32>
    %cst_11 = arith.constant 0.000000e+00 : f32
    %13 = vector.broadcast %cst_11 : f32 to vector<8x128xf32>
    %14 = arith.maximumf %12, %13 : vector<8x128xf32>
    %c0_12 = arith.constant 0 : index
    %c0_13 = arith.constant 0 : index
    %15 = vector.load %arg6[%c0_12, %c0_13] : memref<128x4xf32, #tpu.memory_space<vmem>>, vector<128x4xf32>
    %cst_14 = arith.constant dense<0.000000e+00> : vector<8x4xf32>
    %16 = tpu.matmul %14, %15, %cst_14 {dimension_numbers = #tpu.dot_dimension_numbers<[1], [0], [0], [1], [0, 0, 1, 1], [], []>} : vector<8x128xf32>, vector<128x4xf32>, vector<8x4xf32> -> vector<8x4xf32>
    %c0_15 = arith.constant 0 : index
    %c0_16 = arith.constant 0 : index
    %17 = vector.load %arg7[%c0_15, %c0_16] : memref<1x4xf32, #tpu.memory_space<vmem>>, vector<1x4xf32>
    %18 = vector.broadcast %17 : vector<1x4xf32> to vector<8x4xf32>
    %19 = arith.addf %16, %18 : vector<8x4xf32>
    %c0_17 = arith.constant 0 : index
    %c0_18 = arith.constant 0 : index
    %20 = vector.load %arg8[%c0_17, %c0_18] : memref<8x4xf32, #tpu.memory_space<vmem>>, vector<8x4xf32>
    tpu.vector_store %arg8[%c0_17, %c0_18], %19 {strides = array<i32>} : memref<8x4xf32, #tpu.memory_space<vmem>>, vector<8x4xf32>,
    return
  }
  func.func @transform_0(%arg0: i32) -> (i32, i32) {
    %c0_i32 = arith.constant 0 : i32
    %c0_i32_0 = arith.constant 0 : i32
    return %arg0, %c0_i32 : i32, i32
  }
  func.func @transform_1(%arg0: i32) -> (i32, i32) {
    %c0_i32 = arith.constant 0 : i32
    %c0_i32_0 = arith.constant 0 : i32
    %c0_i32_1 = arith.constant 0 : i32
    return %c0_i32, %c0_i32_0 : i32, i32
  }
  func.func @transform_2(%arg0: i32) -> (i32, i32) {
    %c0_i32 = arith.constant 0 : i32
    %c0_i32_0 = arith.constant 0 : i32
    %c0_i32_1 = arith.constant 0 : i32
    return %c0_i32, %c0_i32_0 : i32, i32
  }
  func.func @transform_3(%arg0: i32) -> (i32, i32) {
    %c0_i32 = arith.constant 0 : i32
    %c0_i32_0 = arith.constant 0 : i32
    %c0_i32_1 = arith.constant 0 : i32
    return %c0_i32, %c0_i32_0 : i32, i32
  }
  func.func @transform_4(%arg0: i32) -> (i32, i32) {
    %c0_i32 = arith.constant 0 : i32
    %c0_i32_0 = arith.constant 0 : i32
    %c0_i32_1 = arith.constant 0 : i32
    return %c0_i32, %c0_i32_0 : i32, i32
  }
  func.func @transform_5(%arg0: i32) -> (i32, i32) {
    %c0_i32 = arith.constant 0 : i32
    %c0_i32_0 = arith.constant 0 : i32
    %c0_i32_1 = arith.constant 0 : i32
    return %c0_i32, %c0_i32_0 : i32, i32
  }
  func.func @transform_6(%arg0: i32) -> (i32, i32) {
    %c0_i32 = arith.constant 0 : i32
    %c0_i32_0 = arith.constant 0 : i32
    %c0_i32_1 = arith.constant 0 : i32
    return %c0_i32, %c0_i32_0 : i32, i32
  }
  func.func @transform_7(%arg0: i32) -> (i32, i32) {
    %c0_i32 = arith.constant 0 : i32
    %c0_i32_0 = arith.constant 0 : i32
    return %arg0, %c0_i32 : i32, i32
  }
}

</mosaic_0001>

<llo_original>
// kernel: tpu_custom_call.1
$region0: #{tpu_custom_call.1}
  #allocation0 [shape = 'u32[]', space=smem, size = 0x4, offset = 0x4, fixed_abs, tag = 'smem constant byte address 0x4 - core index']
  #allocation1 [shape = 'u32[72,128]{1,0:T(1,128)}', space=vmem, size = 0x9000, scoped, tag = 'internal scratch']
  %s0 = inlined_call_operand.vmem [shape: f32[2,16], index: 0, kind: input, shape index: {}]
  %s1 = inlined_call_operand.hbm [shape: f32[16,128], index: 1, kind: input, shape index: {}]
  %s2 = inlined_call_operand.vmem [shape: f32[1,128], index: 2, kind: input, shape index: {}]
  %s3 = inlined_call_operand.vmem [shape: f32[128,128], index: 3, kind: input, shape index: {}]
  %s4 = inlined_call_operand.vmem [shape: f32[1,128], index: 4, kind: input, shape index: {}]
  %s5 = inlined_call_operand.vmem [shape: f32[128,4], index: 5, kind: input, shape index: {}]
  %s6 = inlined_call_operand.vmem [shape: f32[1,4], index: 6, kind: input, shape index: {}]
  %s7 = inlined_call_operand.hbm [shape: f32[2,4], index: 7, kind: output, shape index: {}]
  %s8 = sld [smem:[#allocation0]]
  $region42: #{tpu_custom_call.1} parent=0
    _
  %s10 = ssub.s32 1, %s8
  %s11 = scalar_select 0, %s10, %s8
  $region1: #{tpu_custom_call.1} parent=0
    #allocation2 [shape = 'u8[8192]{0}', space=vmem, size = 0x2000, scoped, tag = 'input window, operand 1, single buffered']
    #allocation3 [shape = 's32[1]{0}', space=sflag, size = 0x4, scoped, tag = 'scoped memory for tpu_custom_call.1']
    #allocation4 [shape = 's32[1]{0}', space=sflag, size = 0x4, scoped, tag = 'scoped memory for tpu_custom_call.1']
    #allocation5 [shape = 'u8[4096]{0}', space=vmem, size = 0x1000, scoped, tag = 'output window, operand 0, single buffered']
    %12 = vsyncpa [#allocation3], 0
    %13 = vsyncpa [#allocation4], 0
    // Predicated region
    $region2: #{tpu_custom_call.1} parent=1 // pred_check
      _
    $region3: #{tpu_custom_call.1} parent=1 // pred_check_branch
      %15 = sbr.rel (0) target = $region5
    $region4: #{tpu_custom_call.1} parent=1 // pred_region
      _
    $region5: #{tpu_custom_call.1} parent=1 // pred_fallthru
      _
    // Predicated region
    $region6: #{tpu_custom_call.1} parent=1 // pred_check
      _
    $region7: #{tpu_custom_call.1} parent=1 // pred_check_branch
      %17 = sbr.rel (0) target = $region9
    $region8: #{tpu_custom_call.1} parent=1 // pred_region
      %19 = vsyncadd [#allocation3], 0
      %s20 = sshll.u32 %s1, 4
      %s21 = int_to_ptr.hbm [resolvable:$true] %s20
      %s22 = sshll.u32 [#allocation2], 4
      %s23 = int_to_ptr.vmem [resolvable:$true] %s22
      %28 = dma.hbm_to_vmem [thread:$0]  %s21, 256, %s23, [#allocation3], 128, 128, 8
    $region9: #{tpu_custom_call.1} parent=1 // pred_fallthru
      _
    // Predicated region
    $region10: #{tpu_custom_call.1} parent=1 // pred_check
      _
    $region11: #{tpu_custom_call.1} parent=1 // pred_check_branch
      %30 = sbr.rel (0) target = $region13
    $region12: #{tpu_custom_call.1} parent=1 // pred_region
      _
    $region13: #{tpu_custom_call.1} parent=1 // pred_fallthru
      _
    // Predicated region
    $region14: #{tpu_custom_call.1} parent=1 // pred_check
      _
    $region15: #{tpu_custom_call.1} parent=1 // pred_check_branch
      %32 = sbr.rel (0) target = $region17
    $region16: #{tpu_custom_call.1} parent=1 // pred_region
      _
    $region17: #{tpu_custom_call.1} parent=1 // pred_fallthru
      _
    // Predicated region
    $region18: #{tpu_custom_call.1} parent=1 // pred_check
      _
    $region19: #{tpu_custom_call.1} parent=1 // pred_check_branch
      %34 = sbr.rel (0) target = $region21
    $region20: #{tpu_custom_call.1} parent=1 // pred_region
      _
    $region21: #{tpu_custom_call.1} parent=1 // pred_fallthru
      _
    // Predicated region
    $region22: #{tpu_custom_call.1} parent=1 // pred_check
      _
    $region23: #{tpu_custom_call.1} parent=1 // pred_check_branch
      %36 = sbr.rel (0) target = $region25
    $region24: #{tpu_custom_call.1} parent=1 // pred_region
      _
    $region25: #{tpu_custom_call.1} parent=1 // pred_fallthru
      _
    // Predicated region
    $region26: #{tpu_custom_call.1} parent=1 // pred_check
      _
    $region27: #{tpu_custom_call.1} parent=1 // pred_check_branch
      %38 = sbr.rel (0) target = $region29
    $region28: #{tpu_custom_call.1} parent=1 // pred_region
      _
    $region29: #{tpu_custom_call.1} parent=1 // pred_fallthru
      _
    // Predicated region
    $region30: #{tpu_custom_call.1} parent=1 // pred_check
      _
    $region31: #{tpu_custom_call.1} parent=1 // pred_check_branch
      %40 = sbr.rel (0) target = $region33
    $region32: #{tpu_custom_call.1} parent=1 // pred_region
      %42 = dma.done [#allocation3], 256
    $region33: #{tpu_custom_call.1} parent=1 // pred_fallthru
      _
    %v43 = vld [vmem:[%s0] sm:$0xff]
    %v44 = vld [vmem:[#allocation2] sm:$0xff]
    %v45 = vld [vmem:[#allocation2 + $0x8] sm:$0xff]
    %v46 = vld [vmem:[%s2] sm:$0x1]
    %v48 = vperm.slane %v46, 0
    %vm50 = vcmask 130048
    %v52 = vsel %vm50, %v43, 0
    %54 = vmatpush.msra.mxu0 0.0
    %55 = vmatpush.msra.mxu0 0.0
    %56 = vmatpush.msra.mxu0 0.0
    %57 = vmatpush.msra.mxu0 0.0
    %58 = vmatpush.msra.mxu0 0.0
    %59 = vmatpush.msra.mxu0 0.0
    %60 = vmatpush.msra.mxu0 0.0
    %61 = vmatpush.msra.mxu0 0.0
    %62 = vmatpush.msra.mxu0 0.0
    %63 = vmatpush.msra.mxu0 0.0
    %64 = vmatpush.msra.mxu0 0.0
    %65 = vmatpush.msra.mxu0 0.0
    %66 = vmatpush.msra.mxu0 0.0
    %67 = vmatpush.msra.mxu0 0.0
    %68 = vmatpush.msra.mxu0 %v45
    %69 = vmatpush.msra.mxu0 %v44
    %70 = vmatmul.f32.gmra.mxu0 %v52
    %v71 = vpop.f32.mrf.mxu0
    %v72 = vadd.f32 %v48, %v71
    %73 = vdwg.mxu0
    %v74 = vmax.f32 %v72, 0.0
    %v75 = vld [vmem:[%s3] sm:$0xff]
    %v76 = vld [vmem:[%s3 + $0x8] sm:$0xff]
    %v77 = vld [vmem:[%s3 + $0x10] sm:$0xff]
    %v78 = vld [vmem:[%s3 + $0x18] sm:$0xff]
    %v79 = vld [vmem:[%s3 + $0x20] sm:$0xff]
    %v80 = vld [vmem:[%s3 + $0x28] sm:$0xff]
    %v81 = vld [vmem:[%s3 + $0x30] sm:$0xff]
    %v82 = vld [vmem:[%s3 + $0x38] sm:$0xff]
    %v83 = vld [vmem:[%s3 + $0x40] sm:$0xff]
    %v84 = vld [vmem:[%s3 + $0x48] sm:$0xff]
    %v85 = vld [vmem:[%s3 + $0x50] sm:$0xff]
    %v86 = vld [vmem:[%s3 + $0x58] sm:$0xff]
    %v87 = vld [vmem:[%s3 + $0x60] sm:$0xff]
    %v88 = vld [vmem:[%s3 + $0x68] sm:$0xff]
    %v89 = vld [vmem:[%s3 + $0x70] sm:$0xff]
    %v90 = vld [vmem:[%s3 + $0x78] sm:$0xff]
    %v91 = vld [vmem:[%s4] sm:$0x1]
    %v93 = vperm.slane %v91, 0
    %95 = vmatpush.msra.mxu0 %v90
    %96 = vmatpush.msra.mxu0 %v89
    %97 = vmatpush.msra.mxu0 %v88
    %98 = vmatpush.msra.mxu0 %v87
    %99 = vmatpush.msra.mxu0 %v86
    %100 = vmatpush.msra.mxu0 %v85
    %101 = vmatpush.msra.mxu0 %v84
    %102 = vmatpush.msra.mxu0 %v83
    %103 = vmatpush.msra.mxu0 %v82
    %104 = vmatpush.msra.mxu0 %v81
    %105 = vmatpush.msra.mxu0 %v80
    %106 = vmatpush.msra.mxu0 %v79
    %107 = vmatpush.msra.mxu0 %v78
    %108 = vmatpush.msra.mxu0 %v77
    %109 = vmatpush.msra.mxu0 %v76
    %110 = vmatpush.msra.mxu0 %v75
    %111 = vmatmul.f32.gmra.mxu0 %v74
    %v112 = vpop.f32.mrf.mxu0
    %v113 = vadd.f32 %v93, %v112
    %114 = vdwg.mxu0
    %v115 = vmax.f32 %v113, 0.0
    %v116 = vld [vmem:[%s5] sm:$0xff]
    %v117 = vld [vmem:[%s5 + $0x8] sm:$0xff]
    %v118 = vld [vmem:[%s5 + $0x10] sm:$0xff]
    %v119 = vld [vmem:[%s5 + $0x18] sm:$0xff]
    %v120 = vld [vmem:[%s5 + $0x20] sm:$0xff]
    %v121 = vld [vmem:[%s5 + $0x28] sm:$0xff]
    %v122 = vld [vmem:[%s5 + $0x30] sm:$0xff]
    %v123 = vld [vmem:[%s5 + $0x38] sm:$0xff]
    %v124 = vld [vmem:[%s5 + $0x40] sm:$0xff]
    %v125 = vld [vmem:[%s5 + $0x48] sm:$0xff]
    %v126 = vld [vmem:[%s5 + $0x50] sm:$0xff]
    %v127 = vld [vmem:[%s5 + $0x58] sm:$0xff]
    %v128 = vld [vmem:[%s5 + $0x60] sm:$0xff]
    %v129 = vld [vmem:[%s5 + $0x68] sm:$0xff]
    %v130 = vld [vmem:[%s5 + $0x70] sm:$0xff]
    %v131 = vld [vmem:[%s5 + $0x78] sm:$0xff]
    %v132 = vld [vmem:[%s6] sm:$0x1]
    %v134 = vperm.slane %v132, 0
    %136 = vmatpush.msra.mxu0 %v131
    %137 = vmatpush.msra.mxu0 %v130
    %138 = vmatpush.msra.mxu0 %v129
    %139 = vmatpush.msra.mxu0 %v128
    %140 = vmatpush.msra.mxu0 %v127
    %141 = vmatpush.msra.mxu0 %v126
    %142 = vmatpush.msra.mxu0 %v125
    %143 = vmatpush.msra.mxu0 %v124
    %144 = vmatpush.msra.mxu0 %v123
    %145 = vmatpush.msra.mxu0 %v122
    %146 = vmatpush.msra.mxu0 %v121
    %147 = vmatpush.msra.mxu0 %v120
    %148 = vmatpush.msra.mxu0 %v119
    %149 = vmatpush.msra.mxu0 %v118
    %150 = vmatpush.msra.mxu0 %v117
    %151 = vmatpush.msra.mxu0 %v116
    %152 = vmatmul.f32.gmra.mxu0 %v115
    %v153 = vpop.f32.mrf.mxu0
    %v154 = vadd.f32 %v134, %v153
    %155 = vdwg.mxu0
    %vm156 = vcmask 31744
    %157 = vst.msk [vmem:[#allocation5] sm:$0xff] %vm156, %v154
    // Predicated region
    $region34: #{tpu_custom_call.1} parent=1 // pred_check
      _
    $region35: #{tpu_custom_call.1} parent=1 // pred_check_branch
      %159 = sbr.rel (0) target = $region37
    $region36: #{tpu_custom_call.1} parent=1 // pred_region
      %161 = vsyncadd [#allocation4], 96
      %s162 = sshll.u32 [#allocation5], 4
      %s163 = int_to_ptr.vmem [resolvable:$true] %s162
      %s164 = sshll.u32 %s7, 4
      %s165 = int_to_ptr.hbm [resolvable:$true] %s164
      %170 = dma.vmem_to_hbm [thread:$0]  %s163, 32, %s165, [#allocation4], 32, 32, 2
    $region37: #{tpu_custom_call.1} parent=1 // pred_fallthru
      _
    // Predicated region
    $region38: #{tpu_custom_call.1} parent=1 // pred_check
      _
    $region39: #{tpu_custom_call.1} parent=1 // pred_check_branch
      %172 = sbr.rel (0) target = $region41
    $region40: #{tpu_custom_call.1} parent=1 // pred_region
      %174 = dma.done [#allocation4], 128
    $region41: #{tpu_custom_call.1} parent=1 // pred_fallthru
      _
    %175 = vsyncpa [#allocation3], 1
    %176 = vsyncpa [#allocation4], 1

</llo_original>
